<compile_context>
chip_gen: v5e
topology: v5e:2x2
jax: 0.10.0
libtpu: 0.0.40
codegen_flags: <defaults>
</compile_context>

<pallas_src>
import functools
import math

import jax
import jax.numpy as jnp
from jax.experimental import pallas as pl
from jax.experimental.pallas import tpu as pltpu


def _round_up(x, m):
    return (x + m - 1) // m * m


def _make_lstm_kernel(num_layers, seq_len, hidden_size, batch_tile, has_seq_scratch):
    """Kernel closed over static num_layers / seq_len / hidden_size / batch_tile."""
    nL, T, H, Bt = num_layers, seq_len, hidden_size, batch_tile

    def kernel(x_ref, *args):
        # args = [wih_T, whh_T, bias]*nL, fcw_T, fcb, out_ref, *scratches
        w_refs = args[: 3 * nL]
        fcw_ref = args[3 * nL]
        fcb_ref = args[3 * nL + 1]
        out_ref = args[3 * nL + 2]
        scratches = args[3 * nL + 3:]
        if has_seq_scratch:
            seq_sc, gx_sc, h_sc, c_sc = scratches
        else:
            gx_sc, h_sc, c_sc = scratches
            seq_sc = None

        for l in range(nL):
            wih = w_refs[3 * l][...]        # (in_l, 4H)
            whh = w_refs[3 * l + 1][...]    # (H, 4H)
            bias = w_refs[3 * l + 2][...]   # (1, 4H), fp32 (bih + bhh pre-summed)

            # Hoisted input projection for ALL timesteps of this layer:
            # one big (T*Bt, in_l) x (in_l, 4H) matmul instead of T tiny ones;
            # bias broadcast folded in (done once per layer, not per step).
            src = x_ref[...] if l == 0 else seq_sc[...]
            gx_sc[...] = (
                jnp.dot(src.astype(wih.dtype), wih,
                        preferred_element_type=jnp.float32)
                + bias
            )

            h_sc[...] = jnp.zeros_like(h_sc)
            c_sc[...] = jnp.zeros_like(c_sc)

            write_seq = l < nL - 1  # only intermediate layers need the full sequence

            def step(t, carry, whh=whh, write_seq=write_seq):
                off = pl.multiple_of(t * Bt, Bt)
                gx_t = gx_sc[pl.ds(off, Bt), :]                    # (Bt, 4H)
                gates = (
                    jnp.dot(h_sc[...].astype(whh.dtype), whh,
                            preferred_element_type=jnp.float32)
                    + gx_t
                )
                i_g = jax.nn.sigmoid(gates[:, 0:H])
                f_g = jax.nn.sigmoid(gates[:, H:2 * H])
                g_g = jnp.tanh(gates[:, 2 * H:3 * H])
                o_g = jax.nn.sigmoid(gates[:, 3 * H:4 * H])

                c_new = f_g * c_sc[...] + i_g * g_g
                h_new = o_g * jnp.tanh(c_new)
                c_sc[...] = c_new
                h_sc[...] = h_new
                if write_seq:
                    # Contiguous, sublane-aligned (Bt, H) store (time-major flat buffer).
                    seq_sc[pl.ds(off, Bt), :] = h_new
                return carry

            jax.lax.fori_loop(0, T, step, 0)

        # Final Linear on the top layer's last hidden state; output is lane-padded.
        out_ref[...] = (
            jnp.dot(h_sc[...].astype(fcw_ref.dtype), fcw_ref[...],
                    preferred_element_type=jnp.float32)
            + fcb_ref[...]
        )

    return kernel


def lstm_model_forward(x, params, *, hidden_size, num_layers, num_keys,
                       batch_tile=8, weight_dtype=jnp.float32):
    """Forward pass equivalent to torch Model(input_size, hidden_size, num_layers, num_keys).

    params: dict with per-layer lists 'wih_T' (in_l,4H), 'whh_T' (H,4H), 'bih' (1,4H),
            'bhh' (1,4H), plus 'fcw_T' (H,K) and 'fcb' (1,K).
    weight_dtype=jnp.bfloat16 halves weight footprint / doubles MXU rate on v6e/v7x;
    accumulation and all gate/cell math stay fp32.
    """
    B, T, in_dim = x.shape
    H = hidden_size
    Bt = max(8, _round_up(batch_tile, 8))
    B_pad = _round_up(max(B, Bt), Bt)
    nB = B_pad // Bt
    K_pad = _round_up(max(num_keys, 128), 128)

    # Pad batch and lay x out as (nB, T*Bt, in_dim), rows ordered (t, batch-within-tile),
    # so each grid step gets a 2-D, time-major, sublane-aligned block with no in-kernel reshape.
    if B_pad != B:
        x = jnp.pad(x, ((0, B_pad - B), (0, 0), (0, 0)))
    x_blocked = (
        x.reshape(nB, Bt, T, in_dim)
         .transpose(0, 2, 1, 3)
         .reshape(nB, T * Bt, in_dim)
    )

    # Weights: pre-transposed for x @ W, biases pre-summed, fc lane-padded to K_pad.
    weight_args = []
    for l in range(num_layers):
        weight_args.append(params["wih_T"][l].astype(weight_dtype))
        weight_args.append(params["whh_T"][l].astype(weight_dtype))
        weight_args.append((params["bih"][l] + params["bhh"][l]).astype(jnp.float32))
    fcw = jnp.zeros((H, K_pad), weight_dtype).at[:, :num_keys].set(
        params["fcw_T"].astype(weight_dtype))
    fcb = jnp.zeros((1, K_pad), jnp.float32).at[:, :num_keys].set(
        params["fcb"].astype(jnp.float32))
    weight_args += [fcw, fcb]

    x_spec = pl.BlockSpec((None, T * Bt, in_dim), lambda b: (b, 0, 0))
    w_specs = [pl.BlockSpec(tuple(w.shape), lambda b: (0, 0)) for w in weight_args]
    out_spec = pl.BlockSpec((Bt, K_pad), lambda b: (b, 0))

    has_seq = num_layers > 1
    scratch_defs = []
    if has_seq:
        scratch_defs.append(((T * Bt, H), jnp.float32))       # intermediate sequence (single buffer)
    scratch_defs += [
        ((T * Bt, 4 * H), jnp.float32),                       # hoisted input-projection gates
        ((Bt, H), jnp.float32),                               # h state
        ((Bt, H), jnp.float32),                               # c state
    ]
    scratch_shapes = [pltpu.VMEM(s, d) for s, d in scratch_defs]

    def _bytes(shape, dtype):
        return math.prod(shape) * jnp.dtype(dtype).itemsize

    footprint = (
        2 * _bytes((T * Bt, in_dim), x.dtype)                 # double-buffered x block
        + 2 * _bytes((Bt, K_pad), jnp.float32)                # double-buffered out block
        + 2 * sum(_bytes(tuple(w.shape), w.dtype) for w in weight_args)
        + sum(_bytes(s, d) for s, d in scratch_defs)
    )
    vmem_limit = int(min(max(2 * footprint + (4 << 20), 32 << 20), 64 << 20))

    kernel = _make_lstm_kernel(num_layers, T, H, Bt, has_seq)

    out = pl.pallas_call(
        kernel,
        out_shape=jax.ShapeDtypeStruct((B_pad, K_pad), jnp.float32),
        grid=(nB,),
        in_specs=[x_spec] + w_specs,
        out_specs=out_spec,
        scratch_shapes=scratch_shapes,
        compiler_params=pltpu.CompilerParams(
            dimension_semantics=("parallel",),
            vmem_limit_bytes=vmem_limit,
        ),
    )(x_blocked, *weight_args)

    return out[:B, :num_keys]


def _reference_forward(x, params, *, hidden_size, num_layers):
    """Pure-JAX reference replicating torch.nn.LSTM (batch_first) + Linear."""
    H = hidden_size
    seq = x
    for l in range(num_layers):
        wih = params["wih_T"][l]
        whh = params["whh_T"][l]
        b = params["bih"][l] + params["bhh"][l]
        Bsz = x.shape[0]
        h = jnp.zeros((Bsz, H), jnp.float32)
        c = jnp.zeros((Bsz, H), jnp.float32)
        outs = []
        for t in range(seq.shape[1]):
            gates = seq[:, t, :] @ wih + h @ whh + b
            i_g = jax.nn.sigmoid(gates[:, 0:H])
            f_g = jax.nn.sigmoid(gates[:, H:2 * H])
            g_g = jnp.tanh(gates[:, 2 * H:3 * H])
            o_g = jax.nn.sigmoid(gates[:, 3 * H:4 * H])
            c = f_g * c + i_g * g_g
            h = o_g * jnp.tanh(c)
            outs.append(h)
        seq = jnp.stack(outs, axis=1)
    return seq[:, -1, :] @ params["fcw_T"] + params["fcb"]


if __name__ == "__main__":
    # Small shapes consistent with Model(input_size, hidden_size, num_layers, num_keys).
    # B=12 exercises batch padding (to 16) and a 2-step parallel batch grid with tile 8.
    B, T = 12, 8
    input_size, hidden_size, num_layers, num_keys = 16, 32, 2, 16

    key = jax.random.PRNGKey(0)
    keys = jax.random.split(key, 4 * num_layers + 3)
    k_iter = iter(keys)

    scale = 1.0 / math.sqrt(hidden_size)  # torch default init range
    params = {"wih_T": [], "whh_T": [], "bih": [], "bhh": []}
    for l in range(num_layers):
        in_dim = input_size if l == 0 else hidden_size
        params["wih_T"].append(
            jax.random.uniform(next(k_iter), (in_dim, 4 * hidden_size),
                               jnp.float32, -scale, scale))
        params["whh_T"].append(
            jax.random.uniform(next(k_iter), (hidden_size, 4 * hidden_size),
                               jnp.float32, -scale, scale))
        params["bih"].append(
            jax.random.uniform(next(k_iter), (1, 4 * hidden_size),
                               jnp.float32, -scale, scale))
        params["bhh"].append(
            jax.random.uniform(next(k_iter), (1, 4 * hidden_size),
                               jnp.float32, -scale, scale))
    params["fcw_T"] = jax.random.uniform(next(k_iter), (hidden_size, num_keys),
                                         jnp.float32, -scale, scale)
    params["fcb"] = jax.random.uniform(next(k_iter), (1, num_keys),
                                       jnp.float32, -scale, scale)

    x = jax.random.normal(next(k_iter), (B, T, input_size), jnp.float32)

    fwd = functools.partial(lstm_model_forward, hidden_size=hidden_size,
                            num_layers=num_layers, num_keys=num_keys,
                            batch_tile=8, weight_dtype=jnp.float32)
    out = jax.block_until_ready(jax.jit(fwd)(x, params))

    ref = _reference_forward(x, params, hidden_size=hidden_size, num_layers=num_layers)
    assert out.shape == (B, num_keys)
    assert jnp.allclose(out, ref, atol=2e-4, rtol=2e-4), "mismatch vs reference"

    print("KERNEL_OK")
</pallas_src>

<mosaic_0001>
module attributes {stable_mosaic.version = 11 : i64} {
  func.func @kernel(%arg0: i32, %arg1: memref<1x64x16xf32, #tpu.memory_space<vmem>>, %arg2: memref<16x128xf32, #tpu.memory_space<vmem>>, %arg3: memref<32x128xf32, #tpu.memory_space<vmem>>, %arg4: memref<1x128xf32, #tpu.memory_space<vmem>>, %arg5: memref<32x128xf32, #tpu.memory_space<vmem>>, %arg6: memref<32x128xf32, #tpu.memory_space<vmem>>, %arg7: memref<1x128xf32, #tpu.memory_space<vmem>>, %arg8: memref<32x128xf32, #tpu.memory_space<vmem>>, %arg9: memref<1x128xf32, #tpu.memory_space<vmem>>, %arg10: memref<8x128xf32, #tpu.memory_space<vmem>>, %arg11: memref<64x32xf32, #tpu.memory_space<vmem>>, %arg12: memref<64x128xf32, #tpu.memory_space<vmem>>, %arg13: memref<8x32xf32, #tpu.memory_space<vmem>>, %arg14: memref<8x32xf32, #tpu.memory_space<vmem>>) attributes {dimension_semantics = [#tpu.dimension_semantics<parallel>], iteration_bounds = array<i64: 2>, scalar_prefetch = 0 : i64, scratch_operands = 4 : i64, tpu.core_type = #tpu.core_type<tc>, window_params = [{transform_indices = @transform_0, window_bounds = array<i64: 1, 64, 16>}, {pipeline_mode = #tpu.pipeline_mode<synchronous>, transform_indices = @transform_1, window_bounds = array<i64: 16, 128>}, {pipeline_mode = #tpu.pipeline_mode<synchronous>, transform_indices = @transform_2, window_bounds = array<i64: 32, 128>}, {pipeline_mode = #tpu.pipeline_mode<synchronous>, transform_indices = @transform_3, window_bounds = array<i64: 1, 128>}, {pipeline_mode = #tpu.pipeline_mode<synchronous>, transform_indices = @transform_4, window_bounds = array<i64: 32, 128>}, {pipeline_mode = #tpu.pipeline_mode<synchronous>, transform_indices = @transform_5, window_bounds = array<i64: 32, 128>}, {pipeline_mode = #tpu.pipeline_mode<synchronous>, transform_indices = @transform_6, window_bounds = array<i64: 1, 128>}, {pipeline_mode = #tpu.pipeline_mode<synchronous>, transform_indices = @transform_7, window_bounds = array<i64: 32, 128>}, {pipeline_mode = #tpu.pipeline_mode<synchronous>, transform_indices = @transform_8, window_bounds = array<i64: 1, 128>}, {transform_indices = @transform_9, window_bounds = array<i64: 8, 128>}]} {
    %c0 = arith.constant 0 : index
    %c0_0 = arith.constant 0 : index
    %0 = vector.load %arg2[%c0, %c0_0] : memref<16x128xf32, #tpu.memory_space<vmem>>, vector<16x128xf32>
    %c0_1 = arith.constant 0 : index
    %c0_2 = arith.constant 0 : index
    %1 = vector.load %arg3[%c0_1, %c0_2] : memref<32x128xf32, #tpu.memory_space<vmem>>, vector<32x128xf32>
    %c0_3 = arith.constant 0 : index
    %c0_4 = arith.constant 0 : index
    %2 = vector.load %arg4[%c0_3, %c0_4] : memref<1x128xf32, #tpu.memory_space<vmem>>, vector<1x128xf32>
    %c0_5 = arith.constant 0 : index
    %c0_6 = arith.constant 0 : index
    %c0_7 = arith.constant 0 : index
    %3 = vector.load %arg1[%c0_5, %c0_6, %c0_7] : memref<1x64x16xf32, #tpu.memory_space<vmem>>, vector<1x64x16xf32>
    %4 = vector.shape_cast %3 : vector<1x64x16xf32> to vector<64x16xf32>
    %cst = arith.constant dense<0.000000e+00> : vector<64x128xf32>
    %5 = tpu.matmul %4, %0, %cst {dimension_numbers = #tpu.dot_dimension_numbers<[1], [0], [0], [1], [0, 0, 1, 1], [], []>} : vector<64x16xf32>, vector<16x128xf32>, vector<64x128xf32> -> vector<64x128xf32>
    %6 = vector.broadcast %2 : vector<1x128xf32> to vector<64x128xf32>
    %7 = arith.addf %5, %6 : vector<64x128xf32>
    %c0_8 = arith.constant 0 : index
    %c0_9 = arith.constant 0 : index
    %8 = vector.load %arg12[%c0_8, %c0_9] : memref<64x128xf32, #tpu.memory_space<vmem>>, vector<64x128xf32>
    tpu.vector_store %arg12[%c0_8, %c0_9], %7 {strides = array<i32>} : memref<64x128xf32, #tpu.memory_space<vmem>>, vector<64x128xf32>,
    %cst_10 = arith.constant 0.000000e+00 : f32
    %9 = vector.broadcast %cst_10 : f32 to vector<8x32xf32>
    %c0_11 = arith.constant 0 : index
    %c0_12 = arith.constant 0 : index
    %10 = vector.load %arg13[%c0_11, %c0_12] : memref<8x32xf32, #tpu.memory_space<vmem>>, vector<8x32xf32>
    tpu.vector_store %arg13[%c0_11, %c0_12], %9 {strides = array<i32>} : memref<8x32xf32, #tpu.memory_space<vmem>>, vector<8x32xf32>,
    %cst_13 = arith.constant 0.000000e+00 : f32
    %11 = vector.broadcast %cst_13 : f32 to vector<8x32xf32>
    %c0_14 = arith.constant 0 : index
    %c0_15 = arith.constant 0 : index
    %12 = vector.load %arg14[%c0_14, %c0_15] : memref<8x32xf32, #tpu.memory_space<vmem>>, vector<8x32xf32>
    tpu.vector_store %arg14[%c0_14, %c0_15], %11 {strides = array<i32>} : memref<8x32xf32, #tpu.memory_space<vmem>>, vector<8x32xf32>,
    %c0_i32 = arith.constant 0 : i32
    %c8_i32 = arith.constant 8 : i32
    %13 = arith.addi %c0_i32, %c8_i32 : i32
    %c1_i32 = arith.constant 1 : i32
    scf.for %arg15 = %c0_i32 to %13 step %c1_i32  : i32 {
      %c8_i32_47 = arith.constant 8 : i32
      %34 = arith.muli %arg15, %c8_i32_47 : i32
      %35 = tpu.assume_multiple %34, 8 : i32
      %36 = arith.index_cast %35 : i32 to index
      %c0_48 = arith.constant 0 : index
      %37 = vector.load %arg12[%36, %c0_48] : memref<64x128xf32, #tpu.memory_space<vmem>>, vector<8x128xf32>
      %c0_49 = arith.constant 0 : index
      %c0_50 = arith.constant 0 : index
      %38 = vector.load %arg13[%c0_49, %c0_50] : memref<8x32xf32, #tpu.memory_space<vmem>>, vector<8x32xf32>
      %cst_51 = arith.constant dense<0.000000e+00> : vector<8x128xf32>
      %39 = tpu.matmul %38, %1, %cst_51 {dimension_numbers = #tpu.dot_dimension_numbers<[1], [0], [0], [1], [0, 0, 1, 1], [], []>} : vector<8x32xf32>, vector<32x128xf32>, vector<8x128xf32> -> vector<8x128xf32>
      %40 = arith.addf %39, %37 : vector<8x128xf32>
      %41 = vector.extract_strided_slice %40 {offsets = [0, 0], sizes = [8, 32], strides = [1, 1]} : vector<8x128xf32> to vector<8x32xf32>
      %42 = arith.negf %41 : vector<8x32xf32>
      %43 = math.exp %42 : vector<8x32xf32>
      %cst_52 = arith.constant 1.000000e+00 : f32
      %44 = vector.broadcast %cst_52 : f32 to vector<8x32xf32>
      %45 = arith.addf %44, %43 : vector<8x32xf32>
      %46 = arith.divf %44, %45 : vector<8x32xf32>
      %47 = vector.extract_strided_slice %40 {offsets = [0, 32], sizes = [8, 32], strides = [1, 1]} : vector<8x128xf32> to vector<8x32xf32>
      %48 = arith.negf %47 : vector<8x32xf32>
      %49 = math.exp %48 : vector<8x32xf32>
      %cst_53 = arith.constant 1.000000e+00 : f32
      %50 = vector.broadcast %cst_53 : f32 to vector<8x32xf32>
      %51 = arith.addf %50, %49 : vector<8x32xf32>
      %52 = arith.divf %50, %51 : vector<8x32xf32>
      %53 = vector.extract_strided_slice %40 {offsets = [0, 64], sizes = [8, 32], strides = [1, 1]} : vector<8x128xf32> to vector<8x32xf32>
      %54 = math.tanh %53 : vector<8x32xf32>
      %55 = vector.extract_strided_slice %40 {offsets = [0, 96], sizes = [8, 32], strides = [1, 1]} : vector<8x128xf32> to vector<8x32xf32>
      %56 = arith.negf %55 : vector<8x32xf32>
      %57 = math.exp %56 : vector<8x32xf32>
      %cst_54 = arith.constant 1.000000e+00 : f32
      %58 = vector.broadcast %cst_54 : f32 to vector<8x32xf32>
      %59 = arith.addf %58, %57 : vector<8x32xf32>
      %60 = arith.divf %58, %59 : vector<8x32xf32>
      %c0_55 = arith.constant 0 : index
      %c0_56 = arith.constant 0 : index
      %61 = vector.load %arg14[%c0_55, %c0_56] : memref<8x32xf32, #tpu.memory_space<vmem>>, vector<8x32xf32>
      %62 = arith.mulf %52, %61 : vector<8x32xf32>
      %63 = arith.mulf %46, %54 : vector<8x32xf32>
      %64 = arith.addf %62, %63 : vector<8x32xf32>
      %65 = math.tanh %64 : vector<8x32xf32>
      %66 = arith.mulf %60, %65 : vector<8x32xf32>
      %c0_57 = arith.constant 0 : index
      %c0_58 = arith.constant 0 : index
      %67 = vector.load %arg14[%c0_57, %c0_58] : memref<8x32xf32, #tpu.memory_space<vmem>>, vector<8x32xf32>
      tpu.vector_store %arg14[%c0_57, %c0_58], %64 {strides = array<i32>} : memref<8x32xf32, #tpu.memory_space<vmem>>, vector<8x32xf32>,
      %c0_59 = arith.constant 0 : index
      %c0_60 = arith.constant 0 : index
      %68 = vector.load %arg13[%c0_59, %c0_60] : memref<8x32xf32, #tpu.memory_space<vmem>>, vector<8x32xf32>
      tpu.vector_store %arg13[%c0_59, %c0_60], %66 {strides = array<i32>} : memref<8x32xf32, #tpu.memory_space<vmem>>, vector<8x32xf32>,
      %69 = arith.index_cast %35 : i32 to index
      %c0_61 = arith.constant 0 : index
      %70 = vector.load %arg11[%69, %c0_61] : memref<64x32xf32, #tpu.memory_space<vmem>>, vector<8x32xf32>
      tpu.vector_store %arg11[%69, %c0_61], %66 {strides = array<i32>} : memref<64x32xf32, #tpu.memory_space<vmem>>, vector<8x32xf32>,
    }
    %c8_i32_16 = arith.constant 8 : i32
    %c0_17 = arith.constant 0 : index
    %c0_18 = arith.constant 0 : index
    %14 = vector.load %arg5[%c0_17, %c0_18] : memref<32x128xf32, #tpu.memory_space<vmem>>, vector<32x128xf32>
    %c0_19 = arith.constant 0 : index
    %c0_20 = arith.constant 0 : index
    %15 = vector.load %arg6[%c0_19, %c0_20] : memref<32x128xf32, #tpu.memory_space<vmem>>, vector<32x128xf32>
    %c0_21 = arith.constant 0 : index
    %c0_22 = arith.constant 0 : index
    %16 = vector.load %arg7[%c0_21, %c0_22] : memref<1x128xf32, #tpu.memory_space<vmem>>, vector<1x128xf32>
    %c0_23 = arith.constant 0 : index
    %c0_24 = arith.constant 0 : index
    %17 = vector.load %arg11[%c0_23, %c0_24] : memref<64x32xf32, #tpu.memory_space<vmem>>, vector<64x32xf32>
    %cst_25 = arith.constant dense<0.000000e+00> : vector<64x128xf32>
    %18 = tpu.matmul %17, %14, %cst_25 {dimension_numbers = #tpu.dot_dimension_numbers<[1], [0], [0], [1], [0, 0, 1, 1], [], []>} : vector<64x32xf32>, vector<32x128xf32>, vector<64x128xf32> -> vector<64x128xf32>
    %19 = vector.broadcast %16 : vector<1x128xf32> to vector<64x128xf32>
    %20 = arith.addf %18, %19 : vector<64x128xf32>
    %c0_26 = arith.constant 0 : index
    %c0_27 = arith.constant 0 : index
    %21 = vector.load %arg12[%c0_26, %c0_27] : memref<64x128xf32, #tpu.memory_space<vmem>>, vector<64x128xf32>
    tpu.vector_store %arg12[%c0_26, %c0_27], %20 {strides = array<i32>} : memref<64x128xf32, #tpu.memory_space<vmem>>, vector<64x128xf32>,
    %cst_28 = arith.constant 0.000000e+00 : f32
    %22 = vector.broadcast %cst_28 : f32 to vector<8x32xf32>
    %c0_29 = arith.constant 0 : index
    %c0_30 = arith.constant 0 : index
    %23 = vector.load %arg13[%c0_29, %c0_30] : memref<8x32xf32, #tpu.memory_space<vmem>>, vector<8x32xf32>
    tpu.vector_store %arg13[%c0_29, %c0_30], %22 {strides = array<i32>} : memref<8x32xf32, #tpu.memory_space<vmem>>, vector<8x32xf32>,
    %cst_31 = arith.constant 0.000000e+00 : f32
    %24 = vector.broadcast %cst_31 : f32 to vector<8x32xf32>
    %c0_32 = arith.constant 0 : index
    %c0_33 = arith.constant 0 : index
    %25 = vector.load %arg14[%c0_32, %c0_33] : memref<8x32xf32, #tpu.memory_space<vmem>>, vector<8x32xf32>
    tpu.vector_store %arg14[%c0_32, %c0_33], %24 {strides = array<i32>} : memref<8x32xf32, #tpu.memory_space<vmem>>, vector<8x32xf32>,
    %c0_i32_34 = arith.constant 0 : i32
    %c8_i32_35 = arith.constant 8 : i32
    %26 = arith.addi %c0_i32_34, %c8_i32_35 : i32
    %c1_i32_36 = arith.constant 1 : i32
    scf.for %arg15 = %c0_i32_34 to %26 step %c1_i32_36  : i32 {
      %c8_i32_47 = arith.constant 8 : i32
      %34 = arith.muli %arg15, %c8_i32_47 : i32
      %35 = tpu.assume_multiple %34, 8 : i32
      %36 = arith.index_cast %35 : i32 to index
      %c0_48 = arith.constant 0 : index
      %37 = vector.load %arg12[%36, %c0_48] : memref<64x128xf32, #tpu.memory_space<vmem>>, vector<8x128xf32>
      %c0_49 = arith.constant 0 : index
      %c0_50 = arith.constant 0 : index
      %38 = vector.load %arg13[%c0_49, %c0_50] : memref<8x32xf32, #tpu.memory_space<vmem>>, vector<8x32xf32>
      %cst_51 = arith.constant dense<0.000000e+00> : vector<8x128xf32>
      %39 = tpu.matmul %38, %15, %cst_51 {dimension_numbers = #tpu.dot_dimension_numbers<[1], [0], [0], [1], [0, 0, 1, 1], [], []>} : vector<8x32xf32>, vector<32x128xf32>, vector<8x128xf32> -> vector<8x128xf32>
      %40 = arith.addf %39, %37 : vector<8x128xf32>
      %41 = vector.extract_strided_slice %40 {offsets = [0, 0], sizes = [8, 32], strides = [1, 1]} : vector<8x128xf32> to vector<8x32xf32>
      %42 = arith.negf %41 : vector<8x32xf32>
      %43 = math.exp %42 : vector<8x32xf32>
      %cst_52 = arith.constant 1.000000e+00 : f32
      %44 = vector.broadcast %cst_52 : f32 to vector<8x32xf32>
      %45 = arith.addf %44, %43 : vector<8x32xf32>
      %46 = arith.divf %44, %45 : vector<8x32xf32>
      %47 = vector.extract_strided_slice %40 {offsets = [0, 32], sizes = [8, 32], strides = [1, 1]} : vector<8x128xf32> to vector<8x32xf32>
      %48 = arith.negf %47 : vector<8x32xf32>
      %49 = math.exp %48 : vector<8x32xf32>
      %cst_53 = arith.constant 1.000000e+00 : f32
      %50 = vector.broadcast %cst_53 : f32 to vector<8x32xf32>
      %51 = arith.addf %50, %49 : vector<8x32xf32>
      %52 = arith.divf %50, %51 : vector<8x32xf32>
      %53 = vector.extract_strided_slice %40 {offsets = [0, 64], sizes = [8, 32], strides = [1, 1]} : vector<8x128xf32> to vector<8x32xf32>
      %54 = math.tanh %53 : vector<8x32xf32>
      %55 = vector.extract_strided_slice %40 {offsets = [0, 96], sizes = [8, 32], strides = [1, 1]} : vector<8x128xf32> to vector<8x32xf32>
      %56 = arith.negf %55 : vector<8x32xf32>
      %57 = math.exp %56 : vector<8x32xf32>
      %cst_54 = arith.constant 1.000000e+00 : f32
      %58 = vector.broadcast %cst_54 : f32 to vector<8x32xf32>
      %59 = arith.addf %58, %57 : vector<8x32xf32>
      %60 = arith.divf %58, %59 : vector<8x32xf32>
      %c0_55 = arith.constant 0 : index
      %c0_56 = arith.constant 0 : index
      %61 = vector.load %arg14[%c0_55, %c0_56] : memref<8x32xf32, #tpu.memory_space<vmem>>, vector<8x32xf32>
      %62 = arith.mulf %52, %61 : vector<8x32xf32>
      %63 = arith.mulf %46, %54 : vector<8x32xf32>
      %64 = arith.addf %62, %63 : vector<8x32xf32>
      %65 = math.tanh %64 : vector<8x32xf32>
      %66 = arith.mulf %60, %65 : vector<8x32xf32>
      %c0_57 = arith.constant 0 : index
      %c0_58 = arith.constant 0 : index
      %67 = vector.load %arg14[%c0_57, %c0_58] : memref<8x32xf32, #tpu.memory_space<vmem>>, vector<8x32xf32>
      tpu.vector_store %arg14[%c0_57, %c0_58], %64 {strides = array<i32>} : memref<8x32xf32, #tpu.memory_space<vmem>>, vector<8x32xf32>,
      %c0_59 = arith.constant 0 : index
      %c0_60 = arith.constant 0 : index
      %68 = vector.load %arg13[%c0_59, %c0_60] : memref<8x32xf32, #tpu.memory_space<vmem>>, vector<8x32xf32>
      tpu.vector_store %arg13[%c0_59, %c0_60], %66 {strides = array<i32>} : memref<8x32xf32, #tpu.memory_space<vmem>>, vector<8x32xf32>,
    }
    %c8_i32_37 = arith.constant 8 : i32
    %c0_38 = arith.constant 0 : index
    %c0_39 = arith.constant 0 : index
    %27 = vector.load %arg13[%c0_38, %c0_39] : memref<8x32xf32, #tpu.memory_space<vmem>>, vector<8x32xf32>
    %c0_40 = arith.constant 0 : index
    %c0_41 = arith.constant 0 : index
    %28 = vector.load %arg8[%c0_40, %c0_41] : memref<32x128xf32, #tpu.memory_space<vmem>>, vector<32x128xf32>
    %cst_42 = arith.constant dense<0.000000e+00> : vector<8x128xf32>
    %29 = tpu.matmul %27, %28, %cst_42 {dimension_numbers = #tpu.dot_dimension_numbers<[1], [0], [0], [1], [0, 0, 1, 1], [], []>} : vector<8x32xf32>, vector<32x128xf32>, vector<8x128xf32> -> vector<8x128xf32>
    %c0_43 = arith.constant 0 : index
    %c0_44 = arith.constant 0 : index
    %30 = vector.load %arg9[%c0_43, %c0_44] : memref<1x128xf32, #tpu.memory_space<vmem>>, vector<1x128xf32>
    %31 = vector.broadcast %30 : vector<1x128xf32> to vector<8x128xf32>
    %32 = arith.addf %29, %31 : vector<8x128xf32>
    %c0_45 = arith.constant 0 : index
    %c0_46 = arith.constant 0 : index
    %33 = vector.load %arg10[%c0_45, %c0_46] : memref<8x128xf32, #tpu.memory_space<vmem>>, vector<8x128xf32>
    tpu.vector_store %arg10[%c0_45, %c0_46], %32 {strides = array<i32>} : memref<8x128xf32, #tpu.memory_space<vmem>>, vector<8x128xf32>,
    return
  }
  func.func @transform_0(%arg0: i32) -> (i32, i32, i32) {
    %c0_i32 = arith.constant 0 : i32
    %c0_i32_0 = arith.constant 0 : i32
    %c0_i32_1 = arith.constant 0 : i32
    return %arg0, %c0_i32, %c0_i32_0 : i32, i32, i32
  }
  func.func @transform_1(%arg0: i32) -> (i32, i32) {
    %c0_i32 = arith.constant 0 : i32
    %c0_i32_0 = arith.constant 0 : i32
    %c0_i32_1 = arith.constant 0 : i32
    return %c0_i32, %c0_i32_0 : i32, i32
  }
  func.func @transform_2(%arg0: i32) -> (i32, i32) {
    %c0_i32 = arith.constant 0 : i32
    %c0_i32_0 = arith.constant 0 : i32
    %c0_i32_1 = arith.constant 0 : i32
    return %c0_i32, %c0_i32_0 : i32, i32
  }
  func.func @transform_3(%arg0: i32) -> (i32, i32) {
    %c0_i32 = arith.constant 0 : i32
    %c0_i32_0 = arith.constant 0 : i32
    %c0_i32_1 = arith.constant 0 : i32
    return %c0_i32, %c0_i32_0 : i32, i32
  }
  func.func @transform_4(%arg0: i32) -> (i32, i32) {
    %c0_i32 = arith.constant 0 : i32
    %c0_i32_0 = arith.constant 0 : i32
    %c0_i32_1 = arith.constant 0 : i32
    return %c0_i32, %c0_i32_0 : i32, i32
  }
  func.func @transform_5(%arg0: i32) -> (i32, i32) {
    %c0_i32 = arith.constant 0 : i32
    %c0_i32_0 = arith.constant 0 : i32
    %c0_i32_1 = arith.constant 0 : i32
    return %c0_i32, %c0_i32_0 : i32, i32
  }
  func.func @transform_6(%arg0: i32) -> (i32, i32) {
    %c0_i32 = arith.constant 0 : i32
    %c0_i32_0 = arith.constant 0 : i32
    %c0_i32_1 = arith.constant 0 : i32
    return %c0_i32, %c0_i32_0 : i32, i32
  }
  func.func @transform_7(%arg0: i32) -> (i32, i32) {
    %c0_i32 = arith.constant 0 : i32
    %c0_i32_0 = arith.constant 0 : i32
    %c0_i32_1 = arith.constant 0 : i32
    return %c0_i32, %c0_i32_0 : i32, i32
  }
  func.func @transform_8(%arg0: i32) -> (i32, i32) {
    %c0_i32 = arith.constant 0 : i32
    %c0_i32_0 = arith.constant 0 : i32
    %c0_i32_1 = arith.constant 0 : i32
    return %c0_i32, %c0_i32_0 : i32, i32
  }
  func.func @transform_9(%arg0: i32) -> (i32, i32) {
    %c0_i32 = arith.constant 0 : i32
    %c0_i32_0 = arith.constant 0 : i32
    return %arg0, %c0_i32 : i32, i32
  }
}

</mosaic_0001>

<llo_original>
// kernel: lstm_model_forward.1
$region0: #{lstm_model_forward.1}
  #allocation0 [shape = 'u32[]', space=smem, size = 0x4, offset = 0x4, fixed_abs, tag = 'smem constant byte address 0x4 - core index']
  #allocation1 [shape = 'u32[72,128]{1,0:T(1,128)}', space=vmem, size = 0x9000, scoped, tag = 'internal scratch']
  #allocation2 [shape = 'f32[64,32]{1,0:T(8,128)}', space=vmem, size = 0x8000, scoped, tag = 'scratch operand']
  #allocation3 [shape = 'f32[64,128]{1,0:T(8,128)}', space=vmem, size = 0x8000, scoped, tag = 'scratch operand']
  #allocation4 [shape = 'f32[8,32]{1,0:T(8,128)}', space=vmem, size = 0x1000, scoped, tag = 'scratch operand']
  #allocation5 [shape = 'f32[8,32]{1,0:T(8,128)}', space=vmem, size = 0x1000, scoped, tag = 'scratch operand']
  %s0 = inlined_call_operand.vmem [shape: f32[2,64,16], index: 0, kind: input, shape index: {}]
  %s1 = inlined_call_operand.vmem [shape: f32[16,128], index: 1, kind: input, shape index: {}]
  %s2 = inlined_call_operand.vmem [shape: f32[32,128], index: 2, kind: input, shape index: {}]
  %s3 = inlined_call_operand.vmem [shape: f32[1,128], index: 3, kind: input, shape index: {}]
  %s4 = inlined_call_operand.vmem [shape: f32[32,128], index: 4, kind: input, shape index: {}]
  %s5 = inlined_call_operand.vmem [shape: f32[32,128], index: 5, kind: input, shape index: {}]
  %s6 = inlined_call_operand.vmem [shape: f32[1,128], index: 6, kind: input, shape index: {}]
  %s7 = inlined_call_operand.vmem [shape: f32[32,128], index: 7, kind: input, shape index: {}]
  %s8 = inlined_call_operand.vmem [shape: f32[1,128], index: 8, kind: input, shape index: {}]
  %s9 = inlined_call_operand.hbm [shape: f32[16,128], index: 9, kind: output, shape index: {}]
  %s10 = sld [smem:[#allocation0]]
  $region83: #{lstm_model_forward.1} parent=0
    _
  %s12 = ssub.s32 1, %s10
  %s13 = scalar_select 0, %s12, %s10
  $region1: #{lstm_model_forward.1} parent=0
    #allocation6 [shape = 'u8[8192]{0}', space=vmem, size = 0x2000, scoped, tag = 'output window, operand 0']
    #allocation7 [shape = 's32[2]{0}', space=sflag, size = 0x8, scoped, tag = 'scoped memory for lstm_model_forward.1']
    %14 = vsyncpa [#allocation7], 0
    %s15 = scalar_lea.sflag [#allocation7], 1
    %16 = vsyncpa %s15, 0
    loop: start=0, step=1, limit=4
    $region2: #{lstm_model_forward.1} parent=1 // loop_pre_header
      _
    $region3: #{lstm_model_forward.1} parent=1 // loop_header
      %s18 = sphi 0, %s22
      %p19 = scmp.ge.s32.totalorder %s18, 4
      %s28 = sphi 0, %s30
      %s31 = sphi 0, %s28
      %s32 = sphi 0, %s31
      %s48 = sphi 0, %s32
      %s52 = sphi 0, %s52
      %s54 = sphi 0, %s52
      %s55 = sphi 0, %s54
      %s69 = sphi 0, %s55
      %s73 = sphi 0, %s73
      %s75 = sphi 0, %s73
      %s76 = sphi 0, %s75
      %s90 = sphi 0, %s76
      %s94 = sphi 0, %s94
      %s96 = sphi 0, %s94
      %s97 = sphi 0, %s96
      %s111 = sphi 0, %s97
      %s115 = sphi 0, %s115
      %s117 = sphi 0, %s115
      %s118 = sphi 0, %s117
      %s132 = sphi 0, %s118
      %s136 = sphi 0, %s136
      %s138 = sphi 0, %s136
      %s139 = sphi 0, %s138
      %s153 = sphi 0, %s139
      %s157 = sphi 0, %s157
      %s159 = sphi 0, %s157
      %s160 = sphi 0, %s159
      %s174 = sphi 0, %s160
      %s178 = sphi 0, %s178
      %s180 = sphi 0, %s178
      %s181 = sphi 0, %s180
      %s195 = sphi 0, %s181
      %s199 = sphi 0, %s199
      %s201 = sphi 0, %s199
      %s202 = sphi 0, %s201
      %s216 = sphi 0, %s202
      %s222 = sphi 0, %s224
      %s225 = sphi 0, %s222
      %s226 = sphi 0, %s225
      %s242 = sphi 0, %s226
    $region4: #{lstm_model_forward.1} parent=1 // loop_header_branch
      %21 = sbr.rel (%p19) target = $region8
    $region5: #{lstm_model_forward.1} parent=1 // loop_body
      %s23 = ssub.s32 %s18, 1
      %s24 = ssub.s32 %s18, 2
      %s25 = sadd.s32 %s18, 1
      %s26 = ssub.s32 %s18, %s25
      %p27 = scmp.eq.s32.totalorder %s26, 0
      %s29 = sadd.s32 %s28, 1
      %s30 = scalar_select %p27, %s28, %s29
      %p33 = pneg %p27
      %p34 = scmp.eq.s32.totalorder %s18, 1
      %p35 = por %p33, %p34
      %p36 = scmp.ne.s32.totalorder %s28, %s31
      %p37 = scmp.eq.s32.totalorder %s18, 0
      %p38 = por %p36, %p37
      %p39 = scmp.ne.s32.totalorder %s28, %s31
      %p40 = scmp.eq.s32.totalorder %s23, 1
      %p41 = por %p39, %p40
      %p42 = scmp.ne.s32.totalorder %s31, %s32
      %p43 = scmp.eq.s32.totalorder %s23, 0
      %p44 = por %p42, %p43
      %p45 = scmp.ne.s32.totalorder %s31, %s32
      %p46 = scmp.eq.s32.totalorder %s24, 1
      %p47 = por %p45, %p46
      %p49 = scmp.ne.s32.totalorder %s32, %s48
      %p50 = scmp.eq.s32.totalorder %s24, 0
      %p51 = por %p49, %p50
      %s53 = sadd.s32 %s52, 1
      %p56 = scmp.eq.s32.totalorder %s18, 1
      %p57 = scmp.ne.s32.totalorder %s52, %s54
      %p58 = scmp.eq.s32.totalorder %s18, 0
      %p59 = por %p57, %p58
      %p60 = scmp.ne.s32.totalorder %s52, %s54
      %p61 = scmp.eq.s32.totalorder %s23, 1
      %p62 = por %p60, %p61
      %p63 = scmp.ne.s32.totalorder %s54, %s55
      %p64 = scmp.eq.s32.totalorder %s23, 0
      %p65 = por %p63, %p64
      %p66 = scmp.ne.s32.totalorder %s54, %s55
      %p67 = scmp.eq.s32.totalorder %s24, 1
      %p68 = por %p66, %p67
      %p70 = scmp.ne.s32.totalorder %s55, %s69
      %p71 = scmp.eq.s32.totalorder %s24, 0
      %p72 = por %p70, %p71
      %s74 = sadd.s32 %s73, 1
      %p77 = scmp.eq.s32.totalorder %s18, 1
      %p78 = scmp.ne.s32.totalorder %s73, %s75
      %p79 = scmp.eq.s32.totalorder %s18, 0
      %p80 = por %p78, %p79
      %p81 = scmp.ne.s32.totalorder %s73, %s75
      %p82 = scmp.eq.s32.totalorder %s23, 1
      %p83 = por %p81, %p82
      %p84 = scmp.ne.s32.totalorder %s75, %s76
      %p85 = scmp.eq.s32.totalorder %s23, 0
      %p86 = por %p84, %p85
      %p87 = scmp.ne.s32.totalorder %s75, %s76
      %p88 = scmp.eq.s32.totalorder %s24, 1
      %p89 = por %p87, %p88
      %p91 = scmp.ne.s32.totalorder %s76, %s90
      %p92 = scmp.eq.s32.totalorder %s24, 0
      %p93 = por %p91, %p92
      %s95 = sadd.s32 %s94, 1
      %p98 = scmp.eq.s32.totalorder %s18, 1
      %p99 = scmp.ne.s32.totalorder %s94, %s96
      %p100 = scmp.eq.s32.totalorder %s18, 0
      %p101 = por %p99, %p100
      %p102 = scmp.ne.s32.totalorder %s94, %s96
      %p103 = scmp.eq.s32.totalorder %s23, 1
      %p104 = por %p102, %p103
      %p105 = scmp.ne.s32.totalorder %s96, %s97
      %p106 = scmp.eq.s32.totalorder %s23, 0
      %p107 = por %p105, %p106
      %p108 = scmp.ne.s32.totalorder %s96, %s97
      %p109 = scmp.eq.s32.totalorder %s24, 1
      %p110 = por %p108, %p109
      %p112 = scmp.ne.s32.totalorder %s97, %s111
      %p113 = scmp.eq.s32.totalorder %s24, 0
      %p114 = por %p112, %p113
      %s116 = sadd.s32 %s115, 1
      %p119 = scmp.eq.s32.totalorder %s18, 1
      %p120 = scmp.ne.s32.totalorder %s115, %s117
      %p121 = scmp.eq.s32.totalorder %s18, 0
      %p122 = por %p120, %p121
      %p123 = scmp.ne.s32.totalorder %s115, %s117
      %p124 = scmp.eq.s32.totalorder %s23, 1
      %p125 = por %p123, %p124
      %p126 = scmp.ne.s32.totalorder %s117, %s118
      %p127 = scmp.eq.s32.totalorder %s23, 0
      %p128 = por %p126, %p127
      %p129 = scmp.ne.s32.totalorder %s117, %s118
      %p130 = scmp.eq.s32.totalorder %s24, 1
      %p131 = por %p129, %p130
      %p133 = scmp.ne.s32.totalorder %s118, %s132
      %p134 = scmp.eq.s32.totalorder %s24, 0
      %p135 = por %p133, %p134
      %s137 = sadd.s32 %s136, 1
      %p140 = scmp.eq.s32.totalorder %s18, 1
      %p141 = scmp.ne.s32.totalorder %s136, %s138
      %p142 = scmp.eq.s32.totalorder %s18, 0
      %p143 = por %p141, %p142
      %p144 = scmp.ne.s32.totalorder %s136, %s138
      %p145 = scmp.eq.s32.totalorder %s23, 1
      %p146 = por %p144, %p145
      %p147 = scmp.ne.s32.totalorder %s138, %s139
      %p148 = scmp.eq.s32.totalorder %s23, 0
      %p149 = por %p147, %p148
      %p150 = scmp.ne.s32.totalorder %s138, %s139
      %p151 = scmp.eq.s32.totalorder %s24, 1
      %p152 = por %p150, %p151
      %p154 = scmp.ne.s32.totalorder %s139, %s153
      %p155 = scmp.eq.s32.totalorder %s24, 0
      %p156 = por %p154, %p155
      %s158 = sadd.s32 %s157, 1
      %p161 = scmp.eq.s32.totalorder %s18, 1
      %p162 = scmp.ne.s32.totalorder %s157, %s159
      %p163 = scmp.eq.s32.totalorder %s18, 0
      %p164 = por %p162, %p163
      %p165 = scmp.ne.s32.totalorder %s157, %s159
      %p166 = scmp.eq.s32.totalorder %s23, 1
      %p167 = por %p165, %p166
      %p168 = scmp.ne.s32.totalorder %s159, %s160
      %p169 = scmp.eq.s32.totalorder %s23, 0
      %p170 = por %p168, %p169
      %p171 = scmp.ne.s32.totalorder %s159, %s160
      %p172 = scmp.eq.s32.totalorder %s24, 1
      %p173 = por %p171, %p172
      %p175 = scmp.ne.s32.totalorder %s160, %s174
      %p176 = scmp.eq.s32.totalorder %s24, 0
      %p177 = por %p175, %p176
      %s179 = sadd.s32 %s178, 1
      %p182 = scmp.eq.s32.totalorder %s18, 1
      %p183 = scmp.ne.s32.totalorder %s178, %s180
      %p184 = scmp.eq.s32.totalorder %s18, 0
      %p185 = por %p183, %p184
      %p186 = scmp.ne.s32.totalorder %s178, %s180
      %p187 = scmp.eq.s32.totalorder %s23, 1
      %p188 = por %p186, %p187
      %p189 = scmp.ne.s32.totalorder %s180, %s181
      %p190 = scmp.eq.s32.totalorder %s23, 0
      %p191 = por %p189, %p190
      %p192 = scmp.ne.s32.totalorder %s180, %s181
      %p193 = scmp.eq.s32.totalorder %s24, 1
      %p194 = por %p192, %p193
      %p196 = scmp.ne.s32.totalorder %s181, %s195
      %p197 = scmp.eq.s32.totalorder %s24, 0
      %p198 = por %p196, %p197
      %s200 = sadd.s32 %s199, 1
      %p203 = scmp.eq.s32.totalorder %s18, 1
      %p204 = scmp.ne.s32.totalorder %s199, %s201
      %p205 = scmp.eq.s32.totalorder %s18, 0
      %p206 = por %p204, %p205
      %p207 = scmp.ne.s32.totalorder %s199, %s201
      %p208 = scmp.eq.s32.totalorder %s23, 1
      %p209 = por %p207, %p208
      %p210 = scmp.ne.s32.totalorder %s201, %s202
      %p211 = scmp.eq.s32.totalorder %s23, 0
      %p212 = por %p210, %p211
      %p213 = scmp.ne.s32.totalorder %s201, %s202
      %p214 = scmp.eq.s32.totalorder %s24, 1
      %p215 = por %p213, %p214
      %p217 = scmp.ne.s32.totalorder %s202, %s216
      %p218 = scmp.eq.s32.totalorder %s24, 0
      %p219 = por %p217, %p218
      %s220 = ssub.s32 %s18, %s25
      %p221 = scmp.eq.s32.totalorder %s220, 0
      %s223 = sadd.s32 %s222, 1
      %s224 = scalar_select %p221, %s222, %s223
      %p227 = pneg %p221
      %p228 = scmp.eq.s32.totalorder %s18, 1
      %p229 = por %p227, %p228
      %p230 = scmp.ne.s32.totalorder %s222, %s225
      %p231 = scmp.eq.s32.totalorder %s18, 0
      %p232 = por %p230, %p231
      %p233 = scmp.ne.s32.totalorder %s222, %s225
      %p234 = scmp.eq.s32.totalorder %s23, 1
      %p235 = por %p233, %p234
      %p236 = scmp.ne.s32.totalorder %s225, %s226
      %p237 = scmp.eq.s32.totalorder %s23, 0
      %p238 = por %p236, %p237
      %p239 = scmp.ne.s32.totalorder %s225, %s226
      %p240 = scmp.eq.s32.totalorder %s24, 1
      %p241 = por %p239, %p240
      %p243 = scmp.ne.s32.totalorder %s226, %s242
      %p244 = scmp.eq.s32.totalorder %s24, 0
      %p245 = por %p243, %p244
      %p246 = scmp.le.s32.totalorder 1, %s18
      %p247 = scmp.lt.s32.totalorder %s18, 3
      %p248 = pnand %p246, %p247
      %p249 = pneg %p248
      // Predicated region
      $region9: #{lstm_model_forward.1} parent=5 // pred_check
        _
      $region10: #{lstm_model_forward.1} parent=5 // pred_check_branch
        %251 = sbr.rel (%p248) target = $region12
      $region11: #{lstm_model_forward.1} parent=5 // pred_region
        %s252 = ssub.s32 %s18, 1
        // Predicated region
        $region13: #{lstm_model_forward.1} parent=11 // pred_check
          %p253 = pneg %p65
        $region14: #{lstm_model_forward.1} parent=11 // pred_check_branch
          %255 = sbr.rel (%p253) target = $region16
        $region15: #{lstm_model_forward.1} parent=11 // pred_region
          _
        $region16: #{lstm_model_forward.1} parent=11 // pred_fallthru
          _
        // Predicated region
        $region17: #{lstm_model_forward.1} parent=11 // pred_check
          %p256 = pneg %p86
        $region18: #{lstm_model_forward.1} parent=11 // pred_check_branch
          %258 = sbr.rel (%p256) target = $region20
        $region19: #{lstm_model_forward.1} parent=11 // pred_region
          _
        $region20: #{lstm_model_forward.1} parent=11 // pred_fallthru
          _
        // Predicated region
        $region21: #{lstm_model_forward.1} parent=11 // pred_check
          %p259 = pneg %p107
        $region22: #{lstm_model_forward.1} parent=11 // pred_check_branch
          %261 = sbr.rel (%p259) target = $region24
        $region23: #{lstm_model_forward.1} parent=11 // pred_region
          _
        $region24: #{lstm_model_forward.1} parent=11 // pred_fallthru
          _
        // Predicated region
        $region25: #{lstm_model_forward.1} parent=11 // pred_check
          %p262 = pneg %p128
        $region26: #{lstm_model_forward.1} parent=11 // pred_check_branch
          %264 = sbr.rel (%p262) target = $region28
        $region27: #{lstm_model_forward.1} parent=11 // pred_region
          _
        $region28: #{lstm_model_forward.1} parent=11 // pred_fallthru
          _
        // Predicated region
        $region29: #{lstm_model_forward.1} parent=11 // pred_check
          %p265 = pneg %p149
        $region30: #{lstm_model_forward.1} parent=11 // pred_check_branch
          %267 = sbr.rel (%p265) target = $region32
        $region31: #{lstm_model_forward.1} parent=11 // pred_region
          _
        $region32: #{lstm_model_forward.1} parent=11 // pred_fallthru
          _
        // Predicated region
        $region33: #{lstm_model_forward.1} parent=11 // pred_check
          %p268 = pneg %p170
        $region34: #{lstm_model_forward.1} parent=11 // pred_check_branch
          %270 = sbr.rel (%p268) target = $region36
        $region35: #{lstm_model_forward.1} parent=11 // pred_region
          _
        $region36: #{lstm_model_forward.1} parent=11 // pred_fallthru
          _
        // Predicated region
        $region37: #{lstm_model_forward.1} parent=11 // pred_check
          %p271 = pneg %p191
        $region38: #{lstm_model_forward.1} parent=11 // pred_check_branch
          %273 = sbr.rel (%p271) target = $region40
        $region39: #{lstm_model_forward.1} parent=11 // pred_region
          _
        $region40: #{lstm_model_forward.1} parent=11 // pred_fallthru
          _
        // Predicated region
        $region41: #{lstm_model_forward.1} parent=11 // pred_check
          %p274 = pneg %p212
        $region42: #{lstm_model_forward.1} parent=11 // pred_check_branch
          %276 = sbr.rel (%p274) target = $region44
        $region43: #{lstm_model_forward.1} parent=11 // pred_region
          _
        $region44: #{lstm_model_forward.1} parent=11 // pred_fallthru
          _
      $region12: #{lstm_model_forward.1} parent=5 // pred_fallthru
        _
      %p277 = scmp.lt.s32.totalorder %s18, 2
      // Predicated region
      $region45: #{lstm_model_forward.1} parent=5 // pred_check
        %p278 = pneg %p277
      $region46: #{lstm_model_forward.1} parent=5 // pred_check_branch
        %280 = sbr.rel (%p278) target = $region48
      $region47: #{lstm_model_forward.1} parent=5 // pred_region
        // Predicated region
        $region49: #{lstm_model_forward.1} parent=47 // pred_check
          %p281 = pneg %p38
        $region50: #{lstm_model_forward.1} parent=47 // pred_check_branch
          %283 = sbr.rel (%p281) target = $region52
        $region51: #{lstm_model_forward.1} parent=47 // pred_region
          %p284 = scmp.lt.s32.totalorder %s18, 1
          %s285 = scalar_select %p284, %s18, 1
          %s286 = smul.addr %s285, 8
          %s287 = smul.addr %s286, 8
          %s288 = scalar_lea.vmem %s0, %s287
        $region52: #{lstm_model_forward.1} parent=47 // pred_fallthru
          _
      $region48: #{lstm_model_forward.1} parent=5 // pred_fallthru
        _
      %p289 = scmp.le.s32.totalorder 1, %s18
      %p290 = scmp.lt.s32.totalorder %s18, 3
      %p291 = pnand %p289, %p290
      %p292 = pneg %p291
      // Predicated region
      $region53: #{lstm_model_forward.1} parent=5 // pred_check
        _
      $region54: #{lstm_model_forward.1} parent=5 // pred_check_branch
        %294 = sbr.rel (%p291) target = $region56
      $region55: #{lstm_model_forward.1} parent=5 // pred_region
        %s295 = ssub.s32 %s18, 1
        %p296 = scmp.lt.s32.totalorder %s23, 1
        %s297 = scalar_select %p296, %s23, 1
        %s298 = smul.addr %s297, 8
        %s299 = smul.addr %s298, 8
        %s300 = scalar_lea.vmem %s0, %s299
        %p301 = pneg %p44
        %p302 = pneg %p41
        %p303 = pneg %p65
        %p304 = pneg %p62
        %p305 = pneg %p86
        %p306 = pneg %p83
        %p307 = pneg %p107
        %p308 = pneg %p104
        %p309 = pneg %p128
        %p310 = pneg %p125
        %p311 = pneg %p149
        %p312 = pneg %p146
        %p313 = pneg %p170
        %p314 = pneg %p167
        %p315 = pneg %p191
        %p316 = pneg %p188
        %p317 = pneg %p212
        %p318 = pneg %p209
        %p319 = pneg %p238
        %p320 = pneg %p235
        %s321 = sand.u32 %s225, 1
        %s322 = scalar_lea.sflag [#allocation7], %s321
        %s323 = sand.u32 %s225, 1
        %s324 = smul.addr %s323, 8
        %s325 = scalar_lea.vmem [#allocation6], %s324
        %p326 = scmp.lt.s32.totalorder %s23, 1
        %s327 = scalar_select %p326, %s23, 1
        %s328 = smul.addr %s327, 8
        %s329 = smul.addr %s328, 8
        %s330 = scalar_lea.vmem %s0, %s329
        %v331 = vld [vmem:[%s1] sm:$0xff]
        %v332 = vld [vmem:[%s1 + $0x8] sm:$0xff]
        %v333 = vld [vmem:[%s2] sm:$0xff]
        %v334 = vld [vmem:[%s2 + $0x8] sm:$0xff]
        %v335 = vld [vmem:[%s2 + $0x10] sm:$0xff]
        %v336 = vld [vmem:[%s2 + $0x18] sm:$0xff]
        %v337 = vld [vmem:[%s3] sm:$0x1]
        %v338 = vld [vmem:[%s330] sm:$0xff]
        %v339 = vld [vmem:[%s330 + $0x8] sm:$0xff]
        %v340 = vld [vmem:[%s330 + $0x10] sm:$0xff]
        %v341 = vld [vmem:[%s330 + $0x18] sm:$0xff]
        %v342 = vld [vmem:[%s330 + $0x20] sm:$0xff]
        %v343 = vld [vmem:[%s330 + $0x28] sm:$0xff]
        %v344 = vld [vmem:[%s330 + $0x30] sm:$0xff]
        %v345 = vld [vmem:[%s330 + $0x38] sm:$0xff]
        %v347 = vperm.slane %v337, 0
        %vm349 = vcmask 130048
        %v351 = vsel %vm349, %v338, 0
        %v354 = vsel %vm349, %v339, 0
        %v357 = vsel %vm349, %v340, 0
        %v360 = vsel %vm349, %v341, 0
        %v363 = vsel %vm349, %v342, 0
        %v366 = vsel %vm349, %v343, 0
        %v369 = vsel %vm349, %v344, 0
        %v372 = vsel %vm349, %v345, 0
        %374 = vmatpush.msra.mxu0 0.0
        %375 = vmatpush.msra.mxu0 0.0
        %376 = vmatpush.msra.mxu0 0.0
        %377 = vmatpush.msra.mxu0 0.0
        %378 = vmatpush.msra.mxu0 0.0
        %379 = vmatpush.msra.mxu0 0.0
        %380 = vmatpush.msra.mxu0 0.0
        %381 = vmatpush.msra.mxu0 0.0
        %382 = vmatpush.msra.mxu0 0.0
        %383 = vmatpush.msra.mxu0 0.0
        %384 = vmatpush.msra.mxu0 0.0
        %385 = vmatpush.msra.mxu0 0.0
        %386 = vmatpush.msra.mxu0 0.0
        %387 = vmatpush.msra.mxu0 0.0
        %388 = vmatpush.msra.mxu0 %v332
        %389 = vmatpush.msra.mxu0 %v331
        %390 = vmatmul.f32.gmra.mxu0 %v351
        %v391 = vpop.f32.mrf.mxu0
        %v392 = vadd.f32 %v347, %v391
        %393 = vmatmul.f32.gmra.mxu0 %v354
        %v394 = vpop.f32.mrf.mxu0
        %v395 = vadd.f32 %v347, %v394
        %396 = vmatmul.f32.gmra.mxu0 %v357
        %v397 = vpop.f32.mrf.mxu0
        %v398 = vadd.f32 %v347, %v397
        %399 = vmatmul.f32.gmra.mxu0 %v360
        %v400 = vpop.f32.mrf.mxu0
        %v401 = vadd.f32 %v347, %v400
        %402 = vmatmul.f32.gmra.mxu0 %v363
        %v403 = vpop.f32.mrf.mxu0
        %v404 = vadd.f32 %v347, %v403
        %405 = vmatmul.f32.gmra.mxu0 %v366
        %v406 = vpop.f32.mrf.mxu0
        %v407 = vadd.f32 %v347, %v406
        %408 = vmatmul.f32.gmra.mxu0 %v369
        %v409 = vpop.f32.mrf.mxu0
        %v410 = vadd.f32 %v347, %v409
        %411 = vmatmul.f32.gmra.mxu0 %v372
        %v412 = vpop.f32.mrf.mxu0
        %v413 = vadd.f32 %v347, %v412
        %414 = vdwg.mxu0
        %415 = vst [vmem:[#allocation3] sm:$0xff] %v392
        %416 = vst [vmem:[#allocation3 + $0x8] sm:$0xff] %v395
        %417 = vst [vmem:[#allocation3 + $0x10] sm:$0xff] %v398
        %418 = vst [vmem:[#allocation3 + $0x18] sm:$0xff] %v401
        %419 = vst [vmem:[#allocation3 + $0x20] sm:$0xff] %v404
        %420 = vst [vmem:[#allocation3 + $0x28] sm:$0xff] %v407
        %421 = vst [vmem:[#allocation3 + $0x30] sm:$0xff] %v410
        %422 = vst [vmem:[#allocation3 + $0x38] sm:$0xff] %v413
        %vm423 = vcmask 261120
        %424 = vst.msk [vmem:[#allocation4] sm:$0xff] %vm423, 0.0
        %425 = vst.msk [vmem:[#allocation5] sm:$0xff] %vm423, 0.0
        loop: start=0, step=1, limit=8
        $region57: #{lstm_model_forward.1} parent=55 // loop_pre_header
          _
        $region58: #{lstm_model_forward.1} parent=55 // loop_header
          %s427 = sphi 0, %s431
          %p428 = scmp.ge.s32.totalorder %s427, 8
        $region59: #{lstm_model_forward.1} parent=55 // loop_header_branch
          %430 = sbr.rel (%p428) target = $region63
        $region60: #{lstm_model_forward.1} parent=55 // loop_body
          %s432 = smul.u32 %s427, 8
          %s433 = scalar_lea.vmem [#allocation3], %s432
          %v434 = vld [vmem:[%s433] sm:$0xff]
          %v435 = vld [vmem:[#allocation4] sm:$0xff]
          %v437 = vsel %vm423, %v435, 0
          %439 = vmatpush.msra.mxu0 0.0
          %440 = vmatpush.msra.mxu0 0.0
          %441 = vmatpush.msra.mxu0 0.0
          %442 = vmatpush.msra.mxu0 0.0
          %443 = vmatpush.msra.mxu0 0.0
          %444 = vmatpush.msra.mxu0 0.0
          %445 = vmatpush.msra.mxu0 0.0
          %446 = vmatpush.msra.mxu0 0.0
          %447 = vmatpush.msra.mxu0 0.0
          %448 = vmatpush.msra.mxu0 0.0
          %449 = vmatpush.msra.mxu0 0.0
          %450 = vmatpush.msra.mxu0 0.0
          %451 = vmatpush.msra.mxu0 %v336
          %452 = vmatpush.msra.mxu0 %v335
          %453 = vmatpush.msra.mxu0 %v334
          %454 = vmatpush.msra.mxu0 %v333
          %455 = vmatmul.f32.gmra.mxu0 %v437
          %v456 = vpop.f32.mrf.mxu0
          %v457 = vadd.f32 %v434, %v456
          %458 = vdwg.mxu0
          %v459 = vxor.u32 %v457, 2147483648
          %v460 = vmul.f32 %v459, 1.442695
          %v461 = vpow.pop %v460
          %v462 = vadd.f32 %v461, 1.0
          %v463 = vrcp.pop %v462
          %v464 = vmul.f32 %v462, %v463
          %v465 = vsub.f32 1.0, %v464
          %v466 = vmul.f32 %v463, %v465
          %v467 = vadd.f32 %v463, %v466
          %vm468 = vweird.f32 %v462
          %vm469 = vweird.f32 %v463
          %vm470 = vmor %vm468, %vm469
          %v471 = vsel %vm470, %v463, %v467
          %v472 = vand.u32 2147483647, %v462
          %vm473 = vcmp.eq.f32.partialorder %v472, 8.507059e+37
          %v474 = vand.u32 %v462, 2147483648
          %v475 = vor.u32 1.1754944e-38, %v474
          %v476 = vsel %vm473, %v475, %v471
          %v477 = vmul.f32 1.0, %v476
          %v478 = vtanh.pop %v457
          %v479 = vld [vmem:[#allocation5] sm:$0xff]
          %481 = vrot.lane.b32.xlu0 %v479, 32
          %v482 = vpop.permute.xlu0 %481
          %v484 = vmul.f32 %v477, %v482
          %486 = vrot.lane.b32.xlu0 %v478, 64
          %v487 = vpop.permute.xlu0 %486
          %v489 = vmul.f32 %v477, %v487
          %491 = vrot.lane.b32.xlu0 %v489, 32
          %v492 = vpop.permute.xlu0 %491
          %v494 = vadd.f32 %v484, %v492
          %v495 = vtanh.pop %v494
          %497 = vrot.lane.b32.xlu0 %v495, 64
          %v498 = vpop.permute.xlu0 %497
          %v500 = vmul.f32 %v477, %v498
          %502 = vrot.lane.b32.xlu0 %v494, 96
          %v503 = vpop.permute.xlu0 %502
          %505 = vst.msk [vmem:[#allocation5] sm:$0xff] %vm423, %v503
          %507 = vrot.lane.b32.xlu0 %v500, 32
          %v508 = vpop.permute.xlu0 %507
          %510 = vst.msk [vmem:[#allocation4] sm:$0xff] %vm423, %v508
          %s511 = scalar_lea.vmem [#allocation2], %s432
          %512 = vst.msk [vmem:[%s511] sm:$0xff] %vm423, %v508
        $region61: #{lstm_model_forward.1} parent=55 // loop_footer
          %s431 = sadd.s32 1, %s427
        $region62: #{lstm_model_forward.1} parent=55 // loop_footer_branch
          %426 = sbr.rel target = $region58
        $region63: #{lstm_model_forward.1} parent=55 // loop_exit
          _
        %v513 = vld [vmem:[%s4] sm:$0xff]
        %v514 = vld [vmem:[%s4 + $0x8] sm:$0xff]
        %v515 = vld [vmem:[%s4 + $0x10] sm:$0xff]
        %v516 = vld [vmem:[%s4 + $0x18] sm:$0xff]
        %v517 = vld [vmem:[%s5] sm:$0xff]
        %v518 = vld [vmem:[%s5 + $0x8] sm:$0xff]
        %v519 = vld [vmem:[%s5 + $0x10] sm:$0xff]
        %v520 = vld [vmem:[%s5 + $0x18] sm:$0xff]
        %v521 = vld [vmem:[%s6] sm:$0x1]
        %v522 = vld [vmem:[#allocation2] sm:$0xff]
        %v523 = vld [vmem:[#allocation2 + $0x8] sm:$0xff]
        %v524 = vld [vmem:[#allocation2 + $0x10] sm:$0xff]
        %v525 = vld [vmem:[#allocation2 + $0x18] sm:$0xff]
        %v526 = vld [vmem:[#allocation2 + $0x20] sm:$0xff]
        %v527 = vld [vmem:[#allocation2 + $0x28] sm:$0xff]
        %v528 = vld [vmem:[#allocation2 + $0x30] sm:$0xff]
        %v529 = vld [vmem:[#allocation2 + $0x38] sm:$0xff]
        %v531 = vperm.slane %v521, 0
        %v534 = vsel %vm423, %v522, 0
        %v537 = vsel %vm423, %v523, 0
        %v540 = vsel %vm423, %v524, 0
        %v543 = vsel %vm423, %v525, 0
        %v546 = vsel %vm423, %v526, 0
        %v549 = vsel %vm423, %v527, 0
        %v552 = vsel %vm423, %v528, 0
        %v555 = vsel %vm423, %v529, 0
        %557 = vmatpush.msra.mxu0 0.0
        %558 = vmatpush.msra.mxu0 0.0
        %559 = vmatpush.msra.mxu0 0.0
        %560 = vmatpush.msra.mxu0 0.0
        %561 = vmatpush.msra.mxu0 0.0
        %562 = vmatpush.msra.mxu0 0.0
        %563 = vmatpush.msra.mxu0 0.0
        %564 = vmatpush.msra.mxu0 0.0
        %565 = vmatpush.msra.mxu0 0.0
        %566 = vmatpush.msra.mxu0 0.0
        %567 = vmatpush.msra.mxu0 0.0
        %568 = vmatpush.msra.mxu0 0.0
        %569 = vmatpush.msra.mxu0 %v516
        %570 = vmatpush.msra.mxu0 %v515
        %571 = vmatpush.msra.mxu0 %v514
        %572 = vmatpush.msra.mxu0 %v513
        %573 = vmatmul.f32.gmra.mxu0 %v534
        %v574 = vpop.f32.mrf.mxu0
        %v575 = vadd.f32 %v531, %v574
        %576 = vmatmul.f32.gmra.mxu0 %v537
        %v577 = vpop.f32.mrf.mxu0
        %v578 = vadd.f32 %v531, %v577
        %579 = vmatmul.f32.gmra.mxu0 %v540
        %v580 = vpop.f32.mrf.mxu0
        %v581 = vadd.f32 %v531, %v580
        %582 = vmatmul.f32.gmra.mxu0 %v543
        %v583 = vpop.f32.mrf.mxu0
        %v584 = vadd.f32 %v531, %v583
        %585 = vmatmul.f32.gmra.mxu0 %v546
        %v586 = vpop.f32.mrf.mxu0
        %v587 = vadd.f32 %v531, %v586
        %588 = vmatmul.f32.gmra.mxu0 %v549
        %v589 = vpop.f32.mrf.mxu0
        %v590 = vadd.f32 %v531, %v589
        %591 = vmatmul.f32.gmra.mxu0 %v552
        %v592 = vpop.f32.mrf.mxu0
        %v593 = vadd.f32 %v531, %v592
        %594 = vmatmul.f32.gmra.mxu0 %v555
        %v595 = vpop.f32.mrf.mxu0
        %v596 = vadd.f32 %v531, %v595
        %597 = vdwg.mxu0
        %598 = vst [vmem:[#allocation3] sm:$0xff] %v575
        %599 = vst [vmem:[#allocation3 + $0x8] sm:$0xff] %v578
        %600 = vst [vmem:[#allocation3 + $0x10] sm:$0xff] %v581
        %601 = vst [vmem:[#allocation3 + $0x18] sm:$0xff] %v584
        %602 = vst [vmem:[#allocation3 + $0x20] sm:$0xff] %v587
        %603 = vst [vmem:[#allocation3 + $0x28] sm:$0xff] %v590
        %604 = vst [vmem:[#allocation3 + $0x30] sm:$0xff] %v593
        %605 = vst [vmem:[#allocation3 + $0x38] sm:$0xff] %v596
        %606 = vst.msk [vmem:[#allocation4] sm:$0xff] %vm423, 0.0
        %607 = vst.msk [vmem:[#allocation5] sm:$0xff] %vm423, 0.0
        loop: start=0, step=1, limit=8
        $region64: #{lstm_model_forward.1} parent=55 // loop_pre_header
          _
        $region65: #{lstm_model_forward.1} parent=55 // loop_header
          %s609 = sphi 0, %s613
          %p610 = scmp.ge.s32.totalorder %s609, 8
        $region66: #{lstm_model_forward.1} parent=55 // loop_header_branch
          %612 = sbr.rel (%p610) target = $region70
        $region67: #{lstm_model_forward.1} parent=55 // loop_body
          %s614 = smul.u32 %s609, 8
          %s615 = scalar_lea.vmem [#allocation3], %s614
          %v616 = vld [vmem:[%s615] sm:$0xff]
          %v617 = vld [vmem:[#allocation4] sm:$0xff]
          %v619 = vsel %vm423, %v617, 0
          %621 = vmatpush.msra.mxu0 0.0
          %622 = vmatpush.msra.mxu0 0.0
          %623 = vmatpush.msra.mxu0 0.0
          %624 = vmatpush.msra.mxu0 0.0
          %625 = vmatpush.msra.mxu0 0.0
          %626 = vmatpush.msra.mxu0 0.0
          %627 = vmatpush.msra.mxu0 0.0
          %628 = vmatpush.msra.mxu0 0.0
          %629 = vmatpush.msra.mxu0 0.0
          %630 = vmatpush.msra.mxu0 0.0
          %631 = vmatpush.msra.mxu0 0.0
          %632 = vmatpush.msra.mxu0 0.0
          %633 = vmatpush.msra.mxu0 %v520
          %634 = vmatpush.msra.mxu0 %v519
          %635 = vmatpush.msra.mxu0 %v518
          %636 = vmatpush.msra.mxu0 %v517
          %637 = vmatmul.f32.gmra.mxu0 %v619
          %v638 = vpop.f32.mrf.mxu0
          %v639 = vadd.f32 %v616, %v638
          %640 = vdwg.mxu0
          %v641 = vxor.u32 %v639, 2147483648
          %v642 = vmul.f32 %v641, 1.442695
          %v643 = vpow.pop %v642
          %v644 = vadd.f32 %v643, 1.0
          %v645 = vrcp.pop %v644
          %v646 = vmul.f32 %v644, %v645
          %v647 = vsub.f32 1.0, %v646
          %v648 = vmul.f32 %v645, %v647
          %v649 = vadd.f32 %v645, %v648
          %vm650 = vweird.f32 %v644
          %vm651 = vweird.f32 %v645
          %vm652 = vmor %vm650, %vm651
          %v653 = vsel %vm652, %v645, %v649
          %v654 = vand.u32 2147483647, %v644
          %vm655 = vcmp.eq.f32.partialorder %v654, 8.507059e+37
          %v656 = vand.u32 %v644, 2147483648
          %v657 = vor.u32 1.1754944e-38, %v656
          %v658 = vsel %vm655, %v657, %v653
          %v659 = vmul.f32 1.0, %v658
          %v660 = vtanh.pop %v639
          %v661 = vld [vmem:[#allocation5] sm:$0xff]
          %663 = vrot.lane.b32.xlu0 %v661, 32
          %v664 = vpop.permute.xlu0 %663
          %v666 = vmul.f32 %v659, %v664
          %668 = vrot.lane.b32.xlu0 %v660, 64
          %v669 = vpop.permute.xlu0 %668
          %v671 = vmul.f32 %v659, %v669
          %673 = vrot.lane.b32.xlu0 %v671, 32
          %v674 = vpop.permute.xlu0 %673
          %v676 = vadd.f32 %v666, %v674
          %v677 = vtanh.pop %v676
          %679 = vrot.lane.b32.xlu0 %v677, 64
          %v680 = vpop.permute.xlu0 %679
          %v682 = vmul.f32 %v659, %v680
          %684 = vrot.lane.b32.xlu0 %v676, 96
          %v685 = vpop.permute.xlu0 %684
          %687 = vst.msk [vmem:[#allocation5] sm:$0xff] %vm423, %v685
          %689 = vrot.lane.b32.xlu0 %v682, 32
          %v690 = vpop.permute.xlu0 %689
          %692 = vst.msk [vmem:[#allocation4] sm:$0xff] %vm423, %v690
        $region68: #{lstm_model_forward.1} parent=55 // loop_footer
          %s613 = sadd.s32 1, %s609
        $region69: #{lstm_model_forward.1} parent=55 // loop_footer_branch
          %608 = sbr.rel target = $region65
        $region70: #{lstm_model_forward.1} parent=55 // loop_exit
          _
        %v693 = vld [vmem:[#allocation4] sm:$0xff]
        %v694 = vld [vmem:[%s7] sm:$0xff]
        %v695 = vld [vmem:[%s7 + $0x8] sm:$0xff]
        %v696 = vld [vmem:[%s7 + $0x10] sm:$0xff]
        %v697 = vld [vmem:[%s7 + $0x18] sm:$0xff]
        %v698 = vld [vmem:[%s8] sm:$0x1]
        %v700 = vperm.slane %v698, 0
        %v703 = vsel %vm423, %v693, 0
        %705 = vmatpush.msra.mxu0 0.0
        %706 = vmatpush.msra.mxu0 0.0
        %707 = vmatpush.msra.mxu0 0.0
        %708 = vmatpush.msra.mxu0 0.0
        %709 = vmatpush.msra.mxu0 0.0
        %710 = vmatpush.msra.mxu0 0.0
        %711 = vmatpush.msra.mxu0 0.0
        %712 = vmatpush.msra.mxu0 0.0
        %713 = vmatpush.msra.mxu0 0.0
        %714 = vmatpush.msra.mxu0 0.0
        %715 = vmatpush.msra.mxu0 0.0
        %716 = vmatpush.msra.mxu0 0.0
        %717 = vmatpush.msra.mxu0 %v697
        %718 = vmatpush.msra.mxu0 %v696
        %719 = vmatpush.msra.mxu0 %v695
        %720 = vmatpush.msra.mxu0 %v694
        %721 = vmatmul.f32.gmra.mxu0 %v703
        %v722 = vpop.f32.mrf.mxu0
        %v723 = vadd.f32 %v700, %v722
        %724 = vdwg.mxu0
        %725 = vst [vmem:[%s325] sm:$0xff] %v723
        %s726 = sand.u32 %s225, 1
        %s727 = scalar_lea.sflag [#allocation7], %s726
        %s728 = sand.u32 %s225, 1
        %s729 = smul.addr %s728, 8
        %s730 = scalar_lea.vmem [#allocation6], %s729
        // Predicated region
        $region71: #{lstm_model_forward.1} parent=55 // pred_check
          %p731 = pneg %p235
        $region72: #{lstm_model_forward.1} parent=55 // pred_check_branch
          %733 = sbr.rel (%p731) target = $region74
        $region73: #{lstm_model_forward.1} parent=55 // pred_region
          %735 = vsyncadd %s727, 0
          %s736 = smul.addr %s23, 8
          %s737 = scalar_lea.hbm %s9, %s736
          %s739 = sshll.u32 %s730, 4
          %s740 = int_to_ptr.vmem [resolvable:$true] %s739
          %s741 = sshll.u32 %s737, 4
          %s742 = int_to_ptr.hbm [resolvable:$true] %s741
          %744 = dma.vmem_to_hbm [thread:$0]  %s740, 128, %s742, %s727
        $region74: #{lstm_model_forward.1} parent=55 // pred_fallthru
          _
      $region56: #{lstm_model_forward.1} parent=5 // pred_fallthru
        _
      %p745 = scmp.le.s32.totalorder 2, %s18
      // Predicated region
      $region75: #{lstm_model_forward.1} parent=5 // pred_check
        %p746 = pneg %p745
      $region76: #{lstm_model_forward.1} parent=5 // pred_check_branch
        %748 = sbr.rel (%p746) target = $region78
      $region77: #{lstm_model_forward.1} parent=5 // pred_region
        %s749 = ssub.s32 %s18, 2
        // Predicated region
        $region79: #{lstm_model_forward.1} parent=77 // pred_check
          %p750 = pneg %p241
        $region80: #{lstm_model_forward.1} parent=77 // pred_check_branch
          %752 = sbr.rel (%p750) target = $region82
        $region81: #{lstm_model_forward.1} parent=77 // pred_region
          %s753 = sand.u32 %s226, 1
          %s754 = scalar_lea.sflag [#allocation7], %s753
          %s755 = sand.u32 %s226, 1
          %s756 = smul.addr %s755, 8
          %s757 = scalar_lea.vmem [#allocation6], %s756
          %759 = dma.done %s754, 128
        $region82: #{lstm_model_forward.1} parent=77 // pred_fallthru
          _
      $region78: #{lstm_model_forward.1} parent=5 // pred_fallthru
        _
    $region6: #{lstm_model_forward.1} parent=1 // loop_footer
      %s22 = sadd.s32 1, %s18
    $region7: #{lstm_model_forward.1} parent=1 // loop_footer_branch
      %17 = sbr.rel target = $region3
    $region8: #{lstm_model_forward.1} parent=1 // loop_exit
      _
    %760 = vsyncpa [#allocation7], 1
    %s761 = scalar_lea.sflag [#allocation7], 1
    %762 = vsyncpa %s761, 1

</llo_original>
